<compile_context>
chip_gen: v5e
topology: v5e:2x2
jax: 0.10.0
libtpu: 0.0.40
codegen_flags: <defaults>
</compile_context>

<pallas_src>
import functools

import jax
import jax.numpy as jnp
from jax.experimental import pallas as pl
from jax.experimental.pallas import tpu as pltpu


def _tree_lstm_kernel(x_ref, c0_ref, w_gates_ref, b_gates_ref,
                      mem_ref, w_attn_ref, b_attn_ref, out_ref):
    """Single-block kernel: fused LSTM gate GEMM + attention + output projection."""
    hdim = c0_ref.shape[1]

    x = x_ref[...]                # [B, E+2H]  (type || parent || h0)
    c0 = c0_ref[...]              # [B, H]

    # ---- LSTMCell gates with fused weights: one GEMM, one bias add ----
    gates = (jnp.dot(x, w_gates_ref[...], preferred_element_type=jnp.float32)
             + b_gates_ref[...])                                  # [B, 4H]

    # One full-width sigmoid over the whole gates vreg; slice i/f/o out of it.
    sig = jax.nn.sigmoid(gates)
    i_g = sig[:, 0 * hdim:1 * hdim]
    f_g = sig[:, 1 * hdim:2 * hdim]
    o_g = sig[:, 3 * hdim:4 * hdim]
    g_g = jnp.tanh(gates[:, 2 * hdim:3 * hdim])

    c = f_g * c0 + i_g * g_g                                      # [B, H]
    h = o_g * jnp.tanh(c)                                         # [B, H]

    # ---- dot-product attention over memory tokens (VPU broadcast + reduce) ----
    mem = mem_ref[...]                                            # [B, T, H]
    scores = jnp.sum(h[:, None, :] * mem, axis=-1)                # [B, T]
    scores = scores - jnp.max(scores, axis=-1, keepdims=True)
    w = jnp.exp(scores)
    w = w * pl.reciprocal(jnp.sum(w, axis=-1, keepdims=True), approx=True)
    attn = jnp.sum(w[:, :, None] * mem, axis=1)                   # [B, H]

    # ---- pred = tanh(cat(attn, h) @ Wattn + b) : single dot on [B, 2H] ----
    proj_in = jnp.concatenate([attn, h], axis=1)                  # [B, 2H]
    pred = jnp.tanh(
        jnp.dot(proj_in, w_attn_ref[...], preferred_element_type=jnp.float32)
        + b_attn_ref[...])                                        # [B, H]

    # ---- single packed output slab: [pred | h | c] ----
    out_ref[...] = jnp.concatenate([pred, h, c], axis=1)          # [B, 3H]


def tree_rnn_cell_lstm_forward(params, internal_state, type_to_predict_features,
                               parent_node_features, memory_tokens):
    """Wrapper mirroring TreeRNNCellLSTM.forward (eval mode)."""
    h0, c0 = internal_state
    b = type_to_predict_features.shape[0]
    hdim = h0.shape[1]

    if parent_node_features is None:
        parent_node_features = jnp.broadcast_to(
            params['root_node_features'][None, :], (b, hdim))

    # Fold h0 into the input concat so the kernel does a single gate GEMM.
    x_cat = jnp.concatenate(
        [type_to_predict_features, parent_node_features, h0], axis=1)  # [B, E+2H]

    vmem = pl.BlockSpec(memory_space=pltpu.MemorySpace.VMEM)
    out = pl.pallas_call(
        _tree_lstm_kernel,
        out_shape=jax.ShapeDtypeStruct((b, 3 * hdim), jnp.float32),
        in_specs=[vmem] * 7,
        out_specs=vmem,
    )(x_cat, c0,
      params['w_gates_t'], params['b_gates'],
      memory_tokens, params['w_attn_t'], params['b_attn'])

    pred = out[:, 0 * hdim:1 * hdim]
    h = out[:, 1 * hdim:2 * hdim]
    c = out[:, 2 * hdim:3 * hdim]
    return pred, (h, c)


def init_params(key, embed_size, hidden_size):
    ks = jax.random.split(key, 8)
    bound = 1.0 / jnp.sqrt(hidden_size)
    in_sz = embed_size + hidden_size
    u = lambda k, shape: jax.random.uniform(k, shape, jnp.float32, -bound, bound)

    # LSTMCell weights, stored pre-transposed: [in, 4H]; gate order i,f,g,o
    w_ih_t = u(ks[0], (in_sz, 4 * hidden_size))
    w_hh_t = u(ks[1], (hidden_size, 4 * hidden_size))
    b_ih = u(ks[2], (1, 4 * hidden_size))
    b_hh = u(ks[3], (1, 4 * hidden_size))

    params = {
        'w_ih_t': w_ih_t,
        'w_hh_t': w_hh_t,
        'b_ih': b_ih,
        'b_hh': b_hh,
        'root_node_features': jax.random.uniform(ks[4], (hidden_size,), jnp.float32),
        'init_cellstate': jnp.zeros((hidden_size,), jnp.float32),
        # attn_linear: Linear(2H -> H), pre-transposed to [2H, H]
        'w_attn_t': u(ks[5], (2 * hidden_size, hidden_size)),
        'b_attn': u(ks[6], (1, hidden_size)),
    }
    # Pre-fused gate weight [(E+H)+H, 4H] and combined bias (algebraically exact).
    params['w_gates_t'] = jnp.concatenate([w_ih_t, w_hh_t], axis=0)
    params['b_gates'] = b_ih + b_hh
    return params


def _reference_forward(params, internal_state, type_feats, parent_feats, mem):
    """Pure-JAX reference for correctness checking (uses unfused weights)."""
    h0, c0 = internal_state
    b = type_feats.shape[0]
    hdim = h0.shape[1]
    if parent_feats is None:
        parent_feats = jnp.broadcast_to(params['root_node_features'][None, :], (b, hdim))
    x = jnp.concatenate([type_feats, parent_feats], axis=1)
    gates = x @ params['w_ih_t'] + params['b_ih'] + h0 @ params['w_hh_t'] + params['b_hh']
    i_g, f_g, g_g, o_g = jnp.split(gates, 4, axis=1)
    i_g, f_g, o_g = jax.nn.sigmoid(i_g), jax.nn.sigmoid(f_g), jax.nn.sigmoid(o_g)
    g_g = jnp.tanh(g_g)
    c = f_g * c0 + i_g * g_g
    h = o_g * jnp.tanh(c)
    scores = jnp.einsum('bd,btd->bt', h, mem)
    w = jax.nn.softmax(scores, axis=-1)
    attn = jnp.einsum('bt,btd->bd', w, mem)
    comb = jnp.concatenate([attn, h], axis=1)
    pred = jnp.tanh(comb @ params['w_attn_t'] + params['b_attn'])
    return pred, (h, c)


if __name__ == "__main__":
    B, E, H, T = 8, 32, 32, 16   # batch, ast_node_embed_size, hidden_size, memory tokens

    key = jax.random.PRNGKey(0)
    kp, k1, k2, k3, k4 = jax.random.split(key, 5)

    params = init_params(kp, E, H)

    type_feats = jax.random.normal(k1, (B, E), jnp.float32)
    h0 = jax.random.normal(k2, (B, H), jnp.float32)
    c0 = jax.random.normal(k3, (B, H), jnp.float32)
    memory_tokens = jax.random.normal(k4, (B, T, H), jnp.float32)

    # parent_node_features=None exercises the root_node_features broadcast path.
    fwd = jax.jit(functools.partial(tree_rnn_cell_lstm_forward, params))
    pred, (h, c) = fwd((h0, c0), type_feats, None, memory_tokens)
    jax.block_until_ready((pred, h, c))

    ref_pred, (ref_h, ref_c) = _reference_forward(
        params, (h0, c0), type_feats, None, memory_tokens)

    assert pred.shape == (B, H) and h.shape == (B, H) and c.shape == (B, H)
    # pred uses the approx EUP reciprocal in the softmax -> relaxed tolerance.
    assert jnp.allclose(pred, ref_pred, atol=1e-3, rtol=1e-3)
    assert jnp.allclose(h, ref_h, atol=1e-5, rtol=1e-5)
    assert jnp.allclose(c, ref_c, atol=1e-5, rtol=1e-5)

    print("KERNEL_OK")
</pallas_src>

<mosaic_0001>
module attributes {stable_mosaic.version = 11 : i64} {
  func.func @_tree_lstm_kernel(%arg0: memref<8x96xf32, #tpu.memory_space<vmem>>, %arg1: memref<8x32xf32, #tpu.memory_space<vmem>>, %arg2: memref<96x128xf32, #tpu.memory_space<vmem>>, %arg3: memref<1x128xf32, #tpu.memory_space<vmem>>, %arg4: memref<8x16x32xf32, #tpu.memory_space<vmem>>, %arg5: memref<64x32xf32, #tpu.memory_space<vmem>>, %arg6: memref<1x32xf32, #tpu.memory_space<vmem>>, %arg7: memref<8x96xf32, #tpu.memory_space<vmem>>) attributes {dimension_semantics = [], scalar_prefetch = 0 : i64, scratch_operands = 0 : i64, tpu.core_type = #tpu.core_type<tc>} {
    %c0 = arith.constant 0 : index
    %c0_0 = arith.constant 0 : index
    %0 = vector.load %arg0[%c0, %c0_0] : memref<8x96xf32, #tpu.memory_space<vmem>>, vector<8x96xf32>
    %c0_1 = arith.constant 0 : index
    %c0_2 = arith.constant 0 : index
    %1 = vector.load %arg1[%c0_1, %c0_2] : memref<8x32xf32, #tpu.memory_space<vmem>>, vector<8x32xf32>
    %c0_3 = arith.constant 0 : index
    %c0_4 = arith.constant 0 : index
    %2 = vector.load %arg2[%c0_3, %c0_4] : memref<96x128xf32, #tpu.memory_space<vmem>>, vector<96x128xf32>
    %cst = arith.constant dense<0.000000e+00> : vector<8x128xf32>
    %3 = tpu.matmul %0, %2, %cst {dimension_numbers = #tpu.dot_dimension_numbers<[1], [0], [0], [1], [0, 0, 1, 1], [], []>} : vector<8x96xf32>, vector<96x128xf32>, vector<8x128xf32> -> vector<8x128xf32>
    %c0_5 = arith.constant 0 : index
    %c0_6 = arith.constant 0 : index
    %4 = vector.load %arg3[%c0_5, %c0_6] : memref<1x128xf32, #tpu.memory_space<vmem>>, vector<1x128xf32>
    %5 = vector.broadcast %4 : vector<1x128xf32> to vector<8x128xf32>
    %6 = arith.addf %3, %5 : vector<8x128xf32>
    %7 = arith.negf %6 : vector<8x128xf32>
    %8 = math.exp %7 : vector<8x128xf32>
    %cst_7 = arith.constant 1.000000e+00 : f32
    %9 = vector.broadcast %cst_7 : f32 to vector<8x128xf32>
    %10 = arith.addf %9, %8 : vector<8x128xf32>
    %11 = arith.divf %9, %10 : vector<8x128xf32>
    %12 = vector.extract_strided_slice %11 {offsets = [0, 0], sizes = [8, 32], strides = [1, 1]} : vector<8x128xf32> to vector<8x32xf32>
    %13 = vector.extract_strided_slice %11 {offsets = [0, 32], sizes = [8, 32], strides = [1, 1]} : vector<8x128xf32> to vector<8x32xf32>
    %14 = vector.extract_strided_slice %11 {offsets = [0, 96], sizes = [8, 32], strides = [1, 1]} : vector<8x128xf32> to vector<8x32xf32>
    %15 = vector.extract_strided_slice %6 {offsets = [0, 64], sizes = [8, 32], strides = [1, 1]} : vector<8x128xf32> to vector<8x32xf32>
    %16 = math.tanh %15 : vector<8x32xf32>
    %17 = arith.mulf %13, %1 : vector<8x32xf32>
    %18 = arith.mulf %12, %16 : vector<8x32xf32>
    %19 = arith.addf %17, %18 : vector<8x32xf32>
    %20 = math.tanh %19 : vector<8x32xf32>
    %21 = arith.mulf %14, %20 : vector<8x32xf32>
    %c0_8 = arith.constant 0 : index
    %c0_9 = arith.constant 0 : index
    %c0_10 = arith.constant 0 : index
    %22 = vector.load %arg4[%c0_8, %c0_9, %c0_10] : memref<8x16x32xf32, #tpu.memory_space<vmem>>, vector<8x16x32xf32>
    %23 = vector.shape_cast %21 : vector<8x32xf32> to vector<8x1x32xf32>
    %24 = vector.broadcast %23 : vector<8x1x32xf32> to vector<8x16x32xf32>
    %25 = arith.mulf %24, %22 : vector<8x16x32xf32>
    %cst_11 = arith.constant dense<0.000000e+00> : vector<8x16xf32>
    %26 = vector.multi_reduction <add>, %25, %cst_11 [2] : vector<8x16x32xf32> to vector<8x16xf32>
    %cst_12 = arith.constant dense<0xFF800000> : vector<8xf32>
    %27 = vector.multi_reduction <maximumf>, %26, %cst_12 [1] : vector<8x16xf32> to vector<8xf32>
    %28 = vector.shape_cast %27 : vector<8xf32> to vector<8x1xf32>
    %29 = vector.broadcast %28 : vector<8x1xf32> to vector<8x16xf32>
    %30 = arith.subf %26, %29 : vector<8x16xf32>
    %31 = math.exp %30 : vector<8x16xf32>
    %cst_13 = arith.constant dense<0.000000e+00> : vector<8xf32>
    %32 = vector.multi_reduction <add>, %31, %cst_13 [1] : vector<8x16xf32> to vector<8xf32>
    %33 = vector.shape_cast %32 : vector<8xf32> to vector<8x1xf32>
    %34 = tpu.reciprocal %33 {approx = true} : vector<8x1xf32> -> vector<8x1xf32>
    %35 = vector.broadcast %34 : vector<8x1xf32> to vector<8x16xf32>
    %36 = arith.mulf %31, %35 : vector<8x16xf32>
    %37 = vector.shape_cast %36 : vector<8x16xf32> to vector<8x16x1xf32>
    %38 = vector.broadcast %37 : vector<8x16x1xf32> to vector<8x16x32xf32>
    %39 = arith.mulf %38, %22 : vector<8x16x32xf32>
    %cst_14 = arith.constant dense<0.000000e+00> : vector<8x32xf32>
    %40 = vector.multi_reduction <add>, %39, %cst_14 [1] : vector<8x16x32xf32> to vector<8x32xf32>
    %41 = tpu.concatenate %40, %21 in 1 : vector<8x32xf32>, vector<8x32xf32> -> vector<8x64xf32>
    %c0_15 = arith.constant 0 : index
    %c0_16 = arith.constant 0 : index
    %42 = vector.load %arg5[%c0_15, %c0_16] : memref<64x32xf32, #tpu.memory_space<vmem>>, vector<64x32xf32>
    %cst_17 = arith.constant dense<0.000000e+00> : vector<8x32xf32>
    %43 = tpu.matmul %41, %42, %cst_17 {dimension_numbers = #tpu.dot_dimension_numbers<[1], [0], [0], [1], [0, 0, 1, 1], [], []>} : vector<8x64xf32>, vector<64x32xf32>, vector<8x32xf32> -> vector<8x32xf32>
    %c0_18 = arith.constant 0 : index
    %c0_19 = arith.constant 0 : index
    %44 = vector.load %arg6[%c0_18, %c0_19] : memref<1x32xf32, #tpu.memory_space<vmem>>, vector<1x32xf32>
    %45 = vector.broadcast %44 : vector<1x32xf32> to vector<8x32xf32>
    %46 = arith.addf %43, %45 : vector<8x32xf32>
    %47 = math.tanh %46 : vector<8x32xf32>
    %48 = tpu.concatenate %47, %21, %19 in 1 : vector<8x32xf32>, vector<8x32xf32>, vector<8x32xf32> -> vector<8x96xf32>
    %c0_20 = arith.constant 0 : index
    %c0_21 = arith.constant 0 : index
    %49 = vector.load %arg7[%c0_20, %c0_21] : memref<8x96xf32, #tpu.memory_space<vmem>>, vector<8x96xf32>
    tpu.vector_store %arg7[%c0_20, %c0_21], %48 {strides = array<i32>} : memref<8x96xf32, #tpu.memory_space<vmem>>, vector<8x96xf32>,
    return
  }
}

</mosaic_0001>

<llo_original>
// kernel: tree_rnn_cell_lstm_forward.1
$region0: #{tree_rnn_cell_lstm_forward.1}
  #allocation0 [shape = 'u32[]', space=smem, size = 0x4, offset = 0x4, fixed_abs, tag = 'smem constant byte address 0x4 - core index']
  #allocation1 [shape = 'u32[72,128]{1,0:T(1,128)}', space=vmem, size = 0x9000, scoped, tag = 'internal scratch']
  %s0 = inlined_call_operand.vmem [shape: f32[8,96], index: 0, kind: input, shape index: {}]
  %s1 = inlined_call_operand.vmem [shape: f32[8,32], index: 1, kind: input, shape index: {}]
  %s2 = inlined_call_operand.hbm [shape: f32[96,128], index: 2, kind: input, shape index: {}]
  %s3 = inlined_call_operand.vmem [shape: f32[1,128], index: 3, kind: input, shape index: {}]
  %s4 = inlined_call_operand.hbm [shape: f32[8,16,32], index: 4, kind: input, shape index: {}]
  %s5 = inlined_call_operand.hbm [shape: f32[64,32], index: 5, kind: input, shape index: {}]
  %s6 = inlined_call_operand.vmem [shape: f32[1,32], index: 6, kind: input, shape index: {}]
  %s7 = inlined_call_operand.vmem [shape: f32[8,96], index: 7, kind: output, shape index: {}]
  %s8 = sld [smem:[#allocation0]]
  $region50: #{tree_rnn_cell_lstm_forward.1} parent=0
    _
  %s10 = ssub.s32 1, %s8
  %s11 = scalar_select 0, %s10, %s8
  $region1: #{tree_rnn_cell_lstm_forward.1} parent=0
    #allocation2 [shape = 'u8[49152]{0}', space=vmem, size = 0xc000, scoped, tag = 'input window, operand 2, single buffered']
    #allocation3 [shape = 's32[1]{0}', space=sflag, size = 0x4, scoped, tag = 'scoped memory for tree_rnn_cell_lstm_forward.1']
    #allocation4 [shape = 'u8[65536]{0}', space=vmem, size = 0x10000, scoped, tag = 'input window, operand 4, single buffered']
    #allocation5 [shape = 's32[1]{0}', space=sflag, size = 0x4, scoped, tag = 'scoped memory for tree_rnn_cell_lstm_forward.1']
    #allocation6 [shape = 'u8[32768]{0}', space=vmem, size = 0x8000, scoped, tag = 'input window, operand 5, single buffered']
    %12 = vsyncpa [#allocation3], 0
    %13 = vsyncpa [#allocation5], 0
    // Predicated region
    $region2: #{tree_rnn_cell_lstm_forward.1} parent=1 // pred_check
      _
    $region3: #{tree_rnn_cell_lstm_forward.1} parent=1 // pred_check_branch
      %15 = sbr.rel (0) target = $region5
    $region4: #{tree_rnn_cell_lstm_forward.1} parent=1 // pred_region
      _
    $region5: #{tree_rnn_cell_lstm_forward.1} parent=1 // pred_fallthru
      _
    // Predicated region
    $region6: #{tree_rnn_cell_lstm_forward.1} parent=1 // pred_check
      _
    $region7: #{tree_rnn_cell_lstm_forward.1} parent=1 // pred_check_branch
      %17 = sbr.rel (0) target = $region9
    $region8: #{tree_rnn_cell_lstm_forward.1} parent=1 // pred_region
      _
    $region9: #{tree_rnn_cell_lstm_forward.1} parent=1 // pred_fallthru
      _
    // Predicated region
    $region10: #{tree_rnn_cell_lstm_forward.1} parent=1 // pred_check
      _
    $region11: #{tree_rnn_cell_lstm_forward.1} parent=1 // pred_check_branch
      %19 = sbr.rel (0) target = $region13
    $region12: #{tree_rnn_cell_lstm_forward.1} parent=1 // pred_region
      %21 = vsyncadd [#allocation3], 0
      %s22 = sshll.u32 %s2, 4
      %s23 = int_to_ptr.hbm [resolvable:$true] %s22
      %s24 = sshll.u32 [#allocation2], 4
      %s25 = int_to_ptr.vmem [resolvable:$true] %s24
      %30 = dma.hbm_to_vmem [thread:$0]  %s23, 1536, %s25, [#allocation3], 128, 128, 8
    $region13: #{tree_rnn_cell_lstm_forward.1} parent=1 // pred_fallthru
      _
    // Predicated region
    $region14: #{tree_rnn_cell_lstm_forward.1} parent=1 // pred_check
      _
    $region15: #{tree_rnn_cell_lstm_forward.1} parent=1 // pred_check_branch
      %32 = sbr.rel (0) target = $region17
    $region16: #{tree_rnn_cell_lstm_forward.1} parent=1 // pred_region
      _
    $region17: #{tree_rnn_cell_lstm_forward.1} parent=1 // pred_fallthru
      _
    // Predicated region
    $region18: #{tree_rnn_cell_lstm_forward.1} parent=1 // pred_check
      _
    $region19: #{tree_rnn_cell_lstm_forward.1} parent=1 // pred_check_branch
      %34 = sbr.rel (0) target = $region21
    $region20: #{tree_rnn_cell_lstm_forward.1} parent=1 // pred_region
      %36 = vsyncadd [#allocation5], 0
      %s37 = sshll.u32 %s4, 4
      %s38 = int_to_ptr.hbm [resolvable:$true] %s37
      %s39 = sshll.u32 [#allocation4], 4
      %s40 = int_to_ptr.vmem [resolvable:$true] %s39
      %45 = dma.hbm_to_vmem [thread:$0]  %s38, 2048, %s40, [#allocation5], 128, 128, 8
    $region21: #{tree_rnn_cell_lstm_forward.1} parent=1 // pred_fallthru
      _
    // Predicated region
    $region22: #{tree_rnn_cell_lstm_forward.1} parent=1 // pred_check
      _
    $region23: #{tree_rnn_cell_lstm_forward.1} parent=1 // pred_check_branch
      %47 = sbr.rel (0) target = $region25
    $region24: #{tree_rnn_cell_lstm_forward.1} parent=1 // pred_region
      %49 = vsyncadd [#allocation5], 0
      %s50 = sshll.u32 %s5, 4
      %s51 = int_to_ptr.hbm [resolvable:$true] %s50
      %s52 = sshll.u32 [#allocation6], 4
      %s53 = int_to_ptr.vmem [resolvable:$true] %s52
      %58 = dma.hbm_to_vmem [thread:$0]  %s51, 1024, %s53, [#allocation5], 128, 128, 8
    $region25: #{tree_rnn_cell_lstm_forward.1} parent=1 // pred_fallthru
      _
    // Predicated region
    $region26: #{tree_rnn_cell_lstm_forward.1} parent=1 // pred_check
      _
    $region27: #{tree_rnn_cell_lstm_forward.1} parent=1 // pred_check_branch
      %60 = sbr.rel (0) target = $region29
    $region28: #{tree_rnn_cell_lstm_forward.1} parent=1 // pred_region
      _
    $region29: #{tree_rnn_cell_lstm_forward.1} parent=1 // pred_fallthru
      _
    // Predicated region
    $region30: #{tree_rnn_cell_lstm_forward.1} parent=1 // pred_check
      _
    $region31: #{tree_rnn_cell_lstm_forward.1} parent=1 // pred_check_branch
      %62 = sbr.rel (0) target = $region33
    $region32: #{tree_rnn_cell_lstm_forward.1} parent=1 // pred_region
      %64 = dma.done [#allocation3], 1536
    $region33: #{tree_rnn_cell_lstm_forward.1} parent=1 // pred_fallthru
      _
    // Predicated region
    $region34: #{tree_rnn_cell_lstm_forward.1} parent=1 // pred_check
      _
    $region35: #{tree_rnn_cell_lstm_forward.1} parent=1 // pred_check_branch
      %66 = sbr.rel (0) target = $region37
    $region36: #{tree_rnn_cell_lstm_forward.1} parent=1 // pred_region
      %68 = dma.done [#allocation5], 2048
    $region37: #{tree_rnn_cell_lstm_forward.1} parent=1 // pred_fallthru
      _
    // Predicated region
    $region38: #{tree_rnn_cell_lstm_forward.1} parent=1 // pred_check
      _
    $region39: #{tree_rnn_cell_lstm_forward.1} parent=1 // pred_check_branch
      %70 = sbr.rel (0) target = $region41
    $region40: #{tree_rnn_cell_lstm_forward.1} parent=1 // pred_region
      %72 = dma.done [#allocation5], 1024
    $region41: #{tree_rnn_cell_lstm_forward.1} parent=1 // pred_fallthru
      _
    %v73 = vld [vmem:[%s0] sm:$0xff]
    %v74 = vld [vmem:[%s1] sm:$0xff]
    %v75 = vld [vmem:[#allocation2] sm:$0xff]
    %v76 = vld [vmem:[#allocation2 + $0x8] sm:$0xff]
    %v77 = vld [vmem:[#allocation2 + $0x10] sm:$0xff]
    %v78 = vld [vmem:[#allocation2 + $0x18] sm:$0xff]
    %v79 = vld [vmem:[#allocation2 + $0x20] sm:$0xff]
    %v80 = vld [vmem:[#allocation2 + $0x28] sm:$0xff]
    %v81 = vld [vmem:[#allocation2 + $0x30] sm:$0xff]
    %v82 = vld [vmem:[#allocation2 + $0x38] sm:$0xff]
    %v83 = vld [vmem:[#allocation2 + $0x40] sm:$0xff]
    %v84 = vld [vmem:[#allocation2 + $0x48] sm:$0xff]
    %v85 = vld [vmem:[#allocation2 + $0x50] sm:$0xff]
    %v86 = vld [vmem:[#allocation2 + $0x58] sm:$0xff]
    %v87 = vld [vmem:[%s3] sm:$0x1]
    %v89 = vperm.slane %v87, 0
    %vm91 = vcmask 785408
    %v93 = vsel %vm91, %v73, 0
    %95 = vmatpush.msra.mxu0 0.0
    %96 = vmatpush.msra.mxu0 0.0
    %97 = vmatpush.msra.mxu0 0.0
    %98 = vmatpush.msra.mxu0 0.0
    %99 = vmatpush.msra.mxu0 %v86
    %100 = vmatpush.msra.mxu0 %v85
    %101 = vmatpush.msra.mxu0 %v84
    %102 = vmatpush.msra.mxu0 %v83
    %103 = vmatpush.msra.mxu0 %v82
    %104 = vmatpush.msra.mxu0 %v81
    %105 = vmatpush.msra.mxu0 %v80
    %106 = vmatpush.msra.mxu0 %v79
    %107 = vmatpush.msra.mxu0 %v78
    %108 = vmatpush.msra.mxu0 %v77
    %109 = vmatpush.msra.mxu0 %v76
    %110 = vmatpush.msra.mxu0 %v75
    %111 = vmatmul.f32.gmra.mxu0 %v93
    %v112 = vpop.f32.mrf.mxu0
    %v113 = vadd.f32 %v89, %v112
    %114 = vdwg.mxu0
    %v115 = vxor.u32 %v113, 2147483648
    %v116 = vmul.f32 %v115, 1.442695
    %v117 = vpow.pop %v116
    %v118 = vadd.f32 %v117, 1.0
    %v119 = vrcp.pop %v118
    %v120 = vmul.f32 %v118, %v119
    %v121 = vsub.f32 1.0, %v120
    %v122 = vmul.f32 %v119, %v121
    %v123 = vadd.f32 %v119, %v122
    %vm124 = vweird.f32 %v118
    %vm125 = vweird.f32 %v119
    %vm126 = vmor %vm124, %vm125
    %v127 = vsel %vm126, %v119, %v123
    %v128 = vand.u32 2147483647, %v118
    %vm129 = vcmp.eq.f32.partialorder %v128, 8.507059e+37
    %v130 = vand.u32 %v118, 2147483648
    %v131 = vor.u32 1.1754944e-38, %v130
    %v132 = vsel %vm129, %v131, %v127
    %v133 = vmul.f32 1.0, %v132
    %v134 = vtanh.pop %v113
    %136 = vrot.lane.b32.xlu0 %v74, 32
    %v137 = vpop.permute.xlu0 %136
    %v139 = vmul.f32 %v133, %v137
    %141 = vrot.lane.b32.xlu0 %v134, 64
    %v142 = vpop.permute.xlu0 %141
    %v144 = vmul.f32 %v133, %v142
    %146 = vrot.lane.b32.xlu0 %v144, 32
    %v147 = vpop.permute.xlu0 %146
    %v149 = vadd.f32 %v139, %v147
    %v150 = vtanh.pop %v149
    %152 = vrot.lane.b32.xlu0 %v150, 64
    %v153 = vpop.permute.xlu0 %152
    %v155 = vmul.f32 %v133, %v153
    %v156 = vld [vmem:[#allocation4] sm:$0xff]
    %v157 = vld [vmem:[#allocation4 + $0x8] sm:$0xff]
    %v158 = vld [vmem:[#allocation4 + $0x10] sm:$0xff]
    %v159 = vld [vmem:[#allocation4 + $0x18] sm:$0xff]
    %v160 = vld [vmem:[#allocation4 + $0x20] sm:$0xff]
    %v161 = vld [vmem:[#allocation4 + $0x28] sm:$0xff]
    %v162 = vld [vmem:[#allocation4 + $0x30] sm:$0xff]
    %v163 = vld [vmem:[#allocation4 + $0x38] sm:$0xff]
    %v164 = vld [vmem:[#allocation4 + $0x40] sm:$0xff]
    %v165 = vld [vmem:[#allocation4 + $0x48] sm:$0xff]
    %v166 = vld [vmem:[#allocation4 + $0x50] sm:$0xff]
    %v167 = vld [vmem:[#allocation4 + $0x58] sm:$0xff]
    %v168 = vld [vmem:[#allocation4 + $0x60] sm:$0xff]
    %v169 = vld [vmem:[#allocation4 + $0x68] sm:$0xff]
    %v170 = vld [vmem:[#allocation4 + $0x70] sm:$0xff]
    %v171 = vld [vmem:[#allocation4 + $0x78] sm:$0xff]
    %v173 = vrot.slane %v155, 1
    %v174 = vrot.slane %v155, 2
    %v175 = vrot.slane %v155, 3
    %v176 = vrot.slane %v155, 4
    %v177 = vrot.slane %v155, 5
    %v178 = vrot.slane %v155, 6
    %v179 = vrot.slane %v155, 7
    %v180 = vperm.slane %v155, 0
    %v181 = vperm.slane %v173, 0
    %v182 = vperm.slane %v174, 0
    %v183 = vperm.slane %v175, 0
    %v184 = vperm.slane %v176, 0
    %v185 = vperm.slane %v177, 0
    %v186 = vperm.slane %v178, 0
    %v187 = vperm.slane %v179, 0
    %212 = vrot.lane.b32.xlu0 %v156, 96
    %v213 = vpop.permute.xlu0 %212
    %214 = vrot.lane.b32.xlu0 %v157, 96
    %v215 = vpop.permute.xlu0 %214
    %216 = vrot.lane.b32.xlu0 %v158, 96
    %v217 = vpop.permute.xlu0 %216
    %218 = vrot.lane.b32.xlu0 %v159, 96
    %v219 = vpop.permute.xlu0 %218
    %220 = vrot.lane.b32.xlu0 %v160, 96
    %v221 = vpop.permute.xlu0 %220
    %222 = vrot.lane.b32.xlu0 %v161, 96
    %v223 = vpop.permute.xlu0 %222
    %224 = vrot.lane.b32.xlu0 %v162, 96
    %v225 = vpop.permute.xlu0 %224
    %226 = vrot.lane.b32.xlu0 %v163, 96
    %v227 = vpop.permute.xlu0 %226
    %228 = vrot.lane.b32.xlu0 %v164, 96
    %v229 = vpop.permute.xlu0 %228
    %230 = vrot.lane.b32.xlu0 %v165, 96
    %v231 = vpop.permute.xlu0 %230
    %232 = vrot.lane.b32.xlu0 %v166, 96
    %v233 = vpop.permute.xlu0 %232
    %234 = vrot.lane.b32.xlu0 %v167, 96
    %v235 = vpop.permute.xlu0 %234
    %236 = vrot.lane.b32.xlu0 %v168, 96
    %v237 = vpop.permute.xlu0 %236
    %238 = vrot.lane.b32.xlu0 %v169, 96
    %v239 = vpop.permute.xlu0 %238
    %240 = vrot.lane.b32.xlu0 %v170, 96
    %v241 = vpop.permute.xlu0 %240
    %242 = vrot.lane.b32.xlu0 %v171, 96
    %v243 = vpop.permute.xlu0 %242
    %v260 = vmul.f32 %v180, %v213
    %v261 = vmul.f32 %v180, %v215
    %v262 = vmul.f32 %v181, %v217
    %v263 = vmul.f32 %v181, %v219
    %v264 = vmul.f32 %v182, %v221
    %v265 = vmul.f32 %v182, %v223
    %v266 = vmul.f32 %v183, %v225
    %v267 = vmul.f32 %v183, %v227
    %v268 = vmul.f32 %v184, %v229
    %v269 = vmul.f32 %v184, %v231
    %v270 = vmul.f32 %v185, %v233
    %v271 = vmul.f32 %v185, %v235
    %v272 = vmul.f32 %v186, %v237
    %v273 = vmul.f32 %v186, %v239
    %v274 = vmul.f32 %v187, %v241
    %v275 = vmul.f32 %v187, %v243
    %292 = vrot.lane.b32.xlu0 %v260, 32
    %v293 = vpop.permute.xlu0 %292
    %294 = vrot.lane.b32.xlu0 %v261, 32
    %v295 = vpop.permute.xlu0 %294
    %296 = vrot.lane.b32.xlu0 %v262, 32
    %v297 = vpop.permute.xlu0 %296
    %298 = vrot.lane.b32.xlu0 %v263, 32
    %v299 = vpop.permute.xlu0 %298
    %300 = vrot.lane.b32.xlu0 %v264, 32
    %v301 = vpop.permute.xlu0 %300
    %302 = vrot.lane.b32.xlu0 %v265, 32
    %v303 = vpop.permute.xlu0 %302
    %304 = vrot.lane.b32.xlu0 %v266, 32
    %v305 = vpop.permute.xlu0 %304
    %306 = vrot.lane.b32.xlu0 %v267, 32
    %v307 = vpop.permute.xlu0 %306
    %308 = vrot.lane.b32.xlu0 %v268, 32
    %v309 = vpop.permute.xlu0 %308
    %310 = vrot.lane.b32.xlu0 %v269, 32
    %v311 = vpop.permute.xlu0 %310
    %312 = vrot.lane.b32.xlu0 %v270, 32
    %v313 = vpop.permute.xlu0 %312
    %314 = vrot.lane.b32.xlu0 %v271, 32
    %v315 = vpop.permute.xlu0 %314
    %316 = vrot.lane.b32.xlu0 %v272, 32
    %v317 = vpop.permute.xlu0 %316
    %318 = vrot.lane.b32.xlu0 %v273, 32
    %v319 = vpop.permute.xlu0 %318
    %320 = vrot.lane.b32.xlu0 %v274, 32
    %v321 = vpop.permute.xlu0 %320
    %322 = vrot.lane.b32.xlu0 %v275, 32
    %v323 = vpop.permute.xlu0 %322
    %vm340 = vcmask 261120
    %v341 = vsel %vm340, %v293, 0.0
    %342 = vadd.xlane.f32.xlu0 %v341
    %v343 = vpop.xlane.xlu0 %342
    %v344 = vsel %vm340, %v295, 0.0
    %345 = vadd.xlane.f32.xlu0 %v344
    %v346 = vpop.xlane.xlu0 %345
    %v347 = vsel %vm340, %v297, 0.0
    %348 = vadd.xlane.f32.xlu0 %v347
    %v349 = vpop.xlane.xlu0 %348
    %v350 = vsel %vm340, %v299, 0.0
    %351 = vadd.xlane.f32.xlu0 %v350
    %v352 = vpop.xlane.xlu0 %351
    %v353 = vsel %vm340, %v301, 0.0
    %354 = vadd.xlane.f32.xlu0 %v353
    %v355 = vpop.xlane.xlu0 %354
    %v356 = vsel %vm340, %v303, 0.0
    %357 = vadd.xlane.f32.xlu0 %v356
    %v358 = vpop.xlane.xlu0 %357
    %v359 = vsel %vm340, %v305, 0.0
    %360 = vadd.xlane.f32.xlu0 %v359
    %v361 = vpop.xlane.xlu0 %360
    %v362 = vsel %vm340, %v307, 0.0
    %363 = vadd.xlane.f32.xlu0 %v362
    %v364 = vpop.xlane.xlu0 %363
    %v365 = vsel %vm340, %v309, 0.0
    %366 = vadd.xlane.f32.xlu0 %v365
    %v367 = vpop.xlane.xlu0 %366
    %v368 = vsel %vm340, %v311, 0.0
    %369 = vadd.xlane.f32.xlu0 %v368
    %v370 = vpop.xlane.xlu0 %369
    %v371 = vsel %vm340, %v313, 0.0
    %372 = vadd.xlane.f32.xlu0 %v371
    %v373 = vpop.xlane.xlu0 %372
    %v374 = vsel %vm340, %v315, 0.0
    %375 = vadd.xlane.f32.xlu0 %v374
    %v376 = vpop.xlane.xlu0 %375
    %v377 = vsel %vm340, %v317, 0.0
    %378 = vadd.xlane.f32.xlu0 %v377
    %v379 = vpop.xlane.xlu0 %378
    %v380 = vsel %vm340, %v319, 0.0
    %381 = vadd.xlane.f32.xlu0 %v380
    %v382 = vpop.xlane.xlu0 %381
    %v383 = vsel %vm340, %v321, 0.0
    %384 = vadd.xlane.f32.xlu0 %v383
    %v385 = vpop.xlane.xlu0 %384
    %v386 = vsel %vm340, %v323, 0.0
    %387 = vadd.xlane.f32.xlu0 %v386
    %v388 = vpop.xlane.xlu0 %387
    %v405 = vlaneseq
    %v406 = vand.u32 %v405, 127
    %v407 = vperm.slane %v343, %v406
    %v408 = vadd.s32 %v406, 4294967288
    %v409 = vperm.slane %v346, %v408
    %vm410 = vcmask 130112
    %v411 = vsel %vm410, %v409, %v407
    %v412 = vperm.slane %v349, %v406
    %v413 = vperm.slane %v352, %v408
    %v414 = vsel %vm410, %v413, %v412
    %v415 = vperm.slane %v355, %v406
    %v416 = vperm.slane %v358, %v408
    %v417 = vsel %vm410, %v416, %v415
    %v418 = vperm.slane %v361, %v406
    %v419 = vperm.slane %v364, %v408
    %v420 = vsel %vm410, %v419, %v418
    %v421 = vperm.slane %v367, %v406
    %v422 = vperm.slane %v370, %v408
    %v423 = vsel %vm410, %v422, %v421
    %v424 = vperm.slane %v373, %v406
    %v425 = vperm.slane %v376, %v408
    %v426 = vsel %vm410, %v425, %v424
    %v427 = vperm.slane %v379, %v406
    %v428 = vperm.slane %v382, %v408
    %v429 = vsel %vm410, %v428, %v427
    %v430 = vperm.slane %v385, %v406
    %v431 = vperm.slane %v388, %v408
    %v432 = vsel %vm410, %v431, %v430
    %vm433 = vcmask 1041409
    %v434 = vsel %vm433, %v414, %v411
    %vm435 = vcmask 1042434
    %v436 = vsel %vm435, %v417, %v434
    %vm437 = vcmask 1043459
    %v438 = vsel %vm437, %v420, %v436
    %vm439 = vcmask 1044484
    %v440 = vsel %vm439, %v423, %v438
    %vm441 = vcmask 1045509
    %v442 = vsel %vm441, %v426, %v440
    %vm443 = vcmask 1046534
    %v444 = vsel %vm443, %v429, %v442
    %vm445 = vcmask 1047559
    %v446 = vsel %vm445, %v432, %v444
    %vm448 = vcmask 130048
    %v449 = vsel %vm448, %v446, -inf
    %450 = vmax.xlane.f32.xlu0 %v449
    %v451 = vpop.xlane.xlu0 %450
    %v453 = vperm.slane %v451, 0
    %v454 = vperm.slane %v451, 1
    %v455 = vperm.slane %v451, 2
    %v456 = vperm.slane %v451, 3
    %v457 = vperm.slane %v451, 4
    %v458 = vperm.slane %v451, 5
    %v459 = vperm.slane %v451, 6
    %v460 = vperm.slane %v451, 7
    %v469 = vsub.f32 %v343, %v453
    %v470 = vsub.f32 %v346, %v453
    %v471 = vsub.f32 %v349, %v454
    %v472 = vsub.f32 %v352, %v454
    %v473 = vsub.f32 %v355, %v455
    %v474 = vsub.f32 %v358, %v455
    %v475 = vsub.f32 %v361, %v456
    %v476 = vsub.f32 %v364, %v456
    %v477 = vsub.f32 %v367, %v457
    %v478 = vsub.f32 %v370, %v457
    %v479 = vsub.f32 %v373, %v458
    %v480 = vsub.f32 %v376, %v458
    %v481 = vsub.f32 %v379, %v459
    %v482 = vsub.f32 %v382, %v459
    %v483 = vsub.f32 %v385, %v460
    %v484 = vsub.f32 %v388, %v460
    %v485 = vmul.f32 %v469, 1.442695
    %v486 = vpow.pop %v485
    %v487 = vmul.f32 %v470, 1.442695
    %v488 = vpow.pop %v487
    %v489 = vmul.f32 %v471, 1.442695
    %v490 = vpow.pop %v489
    %v491 = vmul.f32 %v472, 1.442695
    %v492 = vpow.pop %v491
    %v493 = vmul.f32 %v473, 1.442695
    %v494 = vpow.pop %v493
    %v495 = vmul.f32 %v474, 1.442695
    %v496 = vpow.pop %v495
    %v497 = vmul.f32 %v475, 1.442695
    %v498 = vpow.pop %v497
    %v499 = vmul.f32 %v476, 1.442695
    %v500 = vpow.pop %v499
    %v501 = vmul.f32 %v477, 1.442695
    %v502 = vpow.pop %v501
    %v503 = vmul.f32 %v478, 1.442695
    %v504 = vpow.pop %v503
    %v505 = vmul.f32 %v479, 1.442695
    %v506 = vpow.pop %v505
    %v507 = vmul.f32 %v480, 1.442695
    %v508 = vpow.pop %v507
    %v509 = vmul.f32 %v481, 1.442695
    %v510 = vpow.pop %v509
    %v511 = vmul.f32 %v482, 1.442695
    %v512 = vpow.pop %v511
    %v513 = vmul.f32 %v483, 1.442695
    %v514 = vpow.pop %v513
    %v515 = vmul.f32 %v484, 1.442695
    %v516 = vpow.pop %v515
    %533 = vset.pattern.permute.xlu0 0
    %534 = vperm.xlu0 %533, %v486
    %v535 = vpop.permute.xlu0 %534
    %536 = vset.pattern.permute.xlu0 0
    %537 = vperm.xlu0 %536, %v488
    %v538 = vpop.permute.xlu0 %537
    %539 = vset.pattern.permute.xlu0 0
    %540 = vperm.xlu0 %539, %v490
    %v541 = vpop.permute.xlu0 %540
    %542 = vset.pattern.permute.xlu0 0
    %543 = vperm.xlu0 %542, %v492
    %v544 = vpop.permute.xlu0 %543
    %545 = vset.pattern.permute.xlu0 0
    %546 = vperm.xlu0 %545, %v494
    %v547 = vpop.permute.xlu0 %546
    %548 = vset.pattern.permute.xlu0 0
    %549 = vperm.xlu0 %548, %v496
    %v550 = vpop.permute.xlu0 %549
    %551 = vset.pattern.permute.xlu0 0
    %552 = vperm.xlu0 %551, %v498
    %v553 = vpop.permute.xlu0 %552
    %554 = vset.pattern.permute.xlu0 0
    %555 = vperm.xlu0 %554, %v500
    %v556 = vpop.permute.xlu0 %555
    %557 = vset.pattern.permute.xlu0 0
    %558 = vperm.xlu0 %557, %v502
    %v559 = vpop.permute.xlu0 %558
    %560 = vset.pattern.permute.xlu0 0
    %561 = vperm.xlu0 %560, %v504
    %v562 = vpop.permute.xlu0 %561
    %563 = vset.pattern.permute.xlu0 0
    %564 = vperm.xlu0 %563, %v506
    %v565 = vpop.permute.xlu0 %564
    %566 = vset.pattern.permute.xlu0 0
    %567 = vperm.xlu0 %566, %v508
    %v568 = vpop.permute.xlu0 %567
    %569 = vset.pattern.permute.xlu0 0
    %570 = vperm.xlu0 %569, %v510
    %v571 = vpop.permute.xlu0 %570
    %572 = vset.pattern.permute.xlu0 0
    %573 = vperm.xlu0 %572, %v512
    %v574 = vpop.permute.xlu0 %573
    %575 = vset.pattern.permute.xlu0 0
    %576 = vperm.xlu0 %575, %v514
    %v577 = vpop.permute.xlu0 %576
    %578 = vset.pattern.permute.xlu0 0
    %579 = vperm.xlu0 %578, %v516
    %v580 = vpop.permute.xlu0 %579
    %v581 = vperm.slane %v535, %v406
    %v582 = vperm.slane %v538, %v408
    %v583 = vsel %vm410, %v582, %v581
    %v584 = vperm.slane %v541, %v406
    %v585 = vperm.slane %v544, %v408
    %v586 = vsel %vm410, %v585, %v584
    %v587 = vperm.slane %v547, %v406
    %v588 = vperm.slane %v550, %v408
    %v589 = vsel %vm410, %v588, %v587
    %v590 = vperm.slane %v553, %v406
    %v591 = vperm.slane %v556, %v408
    %v592 = vsel %vm410, %v591, %v590
    %v593 = vperm.slane %v559, %v406
    %v594 = vperm.slane %v562, %v408
    %v595 = vsel %vm410, %v594, %v593
    %v596 = vperm.slane %v565, %v406
    %v597 = vperm.slane %v568, %v408
    %v598 = vsel %vm410, %v597, %v596
    %v599 = vperm.slane %v571, %v406
    %v600 = vperm.slane %v574, %v408
    %v601 = vsel %vm410, %v600, %v599
    %v602 = vperm.slane %v577, %v406
    %v603 = vperm.slane %v580, %v408
    %v604 = vsel %vm410, %v603, %v602
    %v605 = vsel %vm433, %v586, %v583
    %v606 = vsel %vm435, %v589, %v605
    %v607 = vsel %vm437, %v592, %v606
    %v608 = vsel %vm439, %v595, %v607
    %v609 = vsel %vm441, %v598, %v608
    %v610 = vsel %vm443, %v601, %v609
    %v611 = vsel %vm445, %v604, %v610
    %v613 = vsel %vm448, %v611, 0.0
    %614 = vadd.xlane.f32.xlu0 %v613
    %v615 = vpop.xlane.xlu0 %614
    %v616 = vrcp.pop %v615
    %v618 = vperm.slane %v616, 0
    %v619 = vperm.slane %v616, 1
    %v620 = vperm.slane %v616, 2
    %v621 = vperm.slane %v616, 3
    %v622 = vperm.slane %v616, 4
    %v623 = vperm.slane %v616, 5
    %v624 = vperm.slane %v616, 6
    %v625 = vperm.slane %v616, 7
    %v634 = vmul.f32 %v486, %v618
    %v635 = vmul.f32 %v488, %v618
    %v636 = vmul.f32 %v490, %v619
    %v637 = vmul.f32 %v492, %v619
    %v638 = vmul.f32 %v494, %v620
    %v639 = vmul.f32 %v496, %v620
    %v640 = vmul.f32 %v498, %v621
    %v641 = vmul.f32 %v500, %v621
    %v642 = vmul.f32 %v502, %v622
    %v643 = vmul.f32 %v504, %v622
    %v644 = vmul.f32 %v506, %v623
    %v645 = vmul.f32 %v508, %v623
    %v646 = vmul.f32 %v510, %v624
    %v647 = vmul.f32 %v512, %v624
    %v648 = vmul.f32 %v514, %v625
    %v649 = vmul.f32 %v516, %v625
    %651 = vset.pattern.permute.xlu0 0
    %652 = vperm.xlu0 %651, %v634
    %v653 = vpop.permute.xlu0 %652
    %656 = vset.pattern.permute.xlu0 0
    %657 = vperm.xlu0 %656, %v635
    %v658 = vpop.permute.xlu0 %657
    %661 = vset.pattern.permute.xlu0 0
    %662 = vperm.xlu0 %661, %v636
    %v663 = vpop.permute.xlu0 %662
    %666 = vset.pattern.permute.xlu0 0
    %667 = vperm.xlu0 %666, %v637
    %v668 = vpop.permute.xlu0 %667
    %671 = vset.pattern.permute.xlu0 0
    %672 = vperm.xlu0 %671, %v638
    %v673 = vpop.permute.xlu0 %672
    %676 = vset.pattern.permute.xlu0 0
    %677 = vperm.xlu0 %676, %v639
    %v678 = vpop.permute.xlu0 %677
    %681 = vset.pattern.permute.xlu0 0
    %682 = vperm.xlu0 %681, %v640
    %v683 = vpop.permute.xlu0 %682
    %686 = vset.pattern.permute.xlu0 0
    %687 = vperm.xlu0 %686, %v641
    %v688 = vpop.permute.xlu0 %687
    %691 = vset.pattern.permute.xlu0 0
    %692 = vperm.xlu0 %691, %v642
    %v693 = vpop.permute.xlu0 %692
    %696 = vset.pattern.permute.xlu0 0
    %697 = vperm.xlu0 %696, %v643
    %v698 = vpop.permute.xlu0 %697
    %701 = vset.pattern.permute.xlu0 0
    %702 = vperm.xlu0 %701, %v644
    %v703 = vpop.permute.xlu0 %702
    %706 = vset.pattern.permute.xlu0 0
    %707 = vperm.xlu0 %706, %v645
    %v708 = vpop.permute.xlu0 %707
    %711 = vset.pattern.permute.xlu0 0
    %712 = vperm.xlu0 %711, %v646
    %v713 = vpop.permute.xlu0 %712
    %716 = vset.pattern.permute.xlu0 0
    %717 = vperm.xlu0 %716, %v647
    %v718 = vpop.permute.xlu0 %717
    %721 = vset.pattern.permute.xlu0 0
    %722 = vperm.xlu0 %721, %v648
    %v723 = vpop.permute.xlu0 %722
    %726 = vset.pattern.permute.xlu0 0
    %727 = vperm.xlu0 %726, %v649
    %v728 = vpop.permute.xlu0 %727
    %v730 = vmul.f32 %v653, %v156
    %v731 = vmul.f32 %v658, %v157
    %v732 = vmul.f32 %v663, %v158
    %v733 = vmul.f32 %v668, %v159
    %v734 = vmul.f32 %v673, %v160
    %v735 = vmul.f32 %v678, %v161
    %v736 = vmul.f32 %v683, %v162
    %v737 = vmul.f32 %v688, %v163
    %v738 = vmul.f32 %v693, %v164
    %v739 = vmul.f32 %v698, %v165
    %v740 = vmul.f32 %v703, %v166
    %v741 = vmul.f32 %v708, %v167
    %v742 = vmul.f32 %v713, %v168
    %v743 = vmul.f32 %v718, %v169
    %v744 = vmul.f32 %v723, %v170
    %v745 = vmul.f32 %v728, %v171
    %v746 = vsel %vm340, %v730, 0.0
    %v747 = vsel %vm340, %v731, 0.0
    %v748 = vadd.f32 %v746, %v747
    %v749 = vrot.slane %v748, 4
    %v750 = vadd.f32 %v748, %v749
    %v751 = vrot.slane %v750, 2
    %v752 = vadd.f32 %v750, %v751
    %v753 = vrot.slane %v752, 1
    %v754 = vadd.f32 %v752, %v753
    %v755 = vsel %vm340, %v732, 0.0
    %v756 = vsel %vm340, %v733, 0.0
    %v757 = vadd.f32 %v755, %v756
    %v758 = vrot.slane %v757, 4
    %v759 = vadd.f32 %v757, %v758
    %v760 = vrot.slane %v759, 2
    %v761 = vadd.f32 %v759, %v760
    %v762 = vrot.slane %v761, 1
    %v763 = vadd.f32 %v761, %v762
    %v764 = vsel %vm340, %v734, 0.0
    %v765 = vsel %vm340, %v735, 0.0
    %v766 = vadd.f32 %v764, %v765
    %v767 = vrot.slane %v766, 4
    %v768 = vadd.f32 %v766, %v767
    %v769 = vrot.slane %v768, 2
    %v770 = vadd.f32 %v768, %v769
    %v771 = vrot.slane %v770, 1
    %v772 = vadd.f32 %v770, %v771
    %v773 = vsel %vm340, %v736, 0.0
    %v774 = vsel %vm340, %v737, 0.0
    %v775 = vadd.f32 %v773, %v774
    %v776 = vrot.slane %v775, 4
    %v777 = vadd.f32 %v775, %v776
    %v778 = vrot.slane %v777, 2
    %v779 = vadd.f32 %v777, %v778
    %v780 = vrot.slane %v779, 1
    %v781 = vadd.f32 %v779, %v780
    %v782 = vsel %vm340, %v738, 0.0
    %v783 = vsel %vm340, %v739, 0.0
    %v784 = vadd.f32 %v782, %v783
    %v785 = vrot.slane %v784, 4
    %v786 = vadd.f32 %v784, %v785
    %v787 = vrot.slane %v786, 2
    %v788 = vadd.f32 %v786, %v787
    %v789 = vrot.slane %v788, 1
    %v790 = vadd.f32 %v788, %v789
    %v791 = vsel %vm340, %v740, 0.0
    %v792 = vsel %vm340, %v741, 0.0
    %v793 = vadd.f32 %v791, %v792
    %v794 = vrot.slane %v793, 4
    %v795 = vadd.f32 %v793, %v794
    %v796 = vrot.slane %v795, 2
    %v797 = vadd.f32 %v795, %v796
    %v798 = vrot.slane %v797, 1
    %v799 = vadd.f32 %v797, %v798
    %v800 = vsel %vm340, %v742, 0.0
    %v801 = vsel %vm340, %v743, 0.0
    %v802 = vadd.f32 %v800, %v801
    %v803 = vrot.slane %v802, 4
    %v804 = vadd.f32 %v802, %v803
    %v805 = vrot.slane %v804, 2
    %v806 = vadd.f32 %v804, %v805
    %v807 = vrot.slane %v806, 1
    %v808 = vadd.f32 %v806, %v807
    %v809 = vsel %vm340, %v744, 0.0
    %v810 = vsel %vm340, %v745, 0.0
    %v811 = vadd.f32 %v809, %v810
    %v812 = vrot.slane %v811, 4
    %v813 = vadd.f32 %v811, %v812
    %v814 = vrot.slane %v813, 2
    %v815 = vadd.f32 %v813, %v814
    %v816 = vrot.slane %v815, 1
    %v817 = vadd.f32 %v815, %v816
    %v826 = vsel %vm433, %v763, %v754
    %v827 = vsel %vm435, %v772, %v826
    %v828 = vsel %vm437, %v781, %v827
    %v829 = vsel %vm439, %v790, %v828
    %v830 = vsel %vm441, %v799, %v829
    %v831 = vsel %vm443, %v808, %v830
    %v832 = vsel %vm445, %v817, %v831
    %834 = vrot.lane.b32.xlu0 %v155, 64
    %v835 = vpop.permute.xlu0 %834
    %v837 = vsel %vm340, %v832, %v835
    %v838 = vld [vmem:[#allocation6] sm:$0xff]
    %v839 = vld [vmem:[#allocation6 + $0x8] sm:$0xff]
    %v840 = vld [vmem:[#allocation6 + $0x10] sm:$0xff]
    %v841 = vld [vmem:[#allocation6 + $0x18] sm:$0xff]
    %v842 = vld [vmem:[#allocation6 + $0x20] sm:$0xff]
    %v843 = vld [vmem:[#allocation6 + $0x28] sm:$0xff]
    %v844 = vld [vmem:[#allocation6 + $0x30] sm:$0xff]
    %v845 = vld [vmem:[#allocation6 + $0x38] sm:$0xff]
    %v846 = vld [vmem:[%s6] sm:$0x1]
    %v848 = vperm.slane %v846, 0
    %vm850 = vcmask 523264
    %v852 = vsel %vm850, %v837, 0
    %854 = vmatpush.msra.mxu0 0.0
    %855 = vmatpush.msra.mxu0 0.0
    %856 = vmatpush.msra.mxu0 0.0
    %857 = vmatpush.msra.mxu0 0.0
    %858 = vmatpush.msra.mxu0 0.0
    %859 = vmatpush.msra.mxu0 0.0
    %860 = vmatpush.msra.mxu0 0.0
    %861 = vmatpush.msra.mxu0 0.0
    %862 = vmatpush.msra.mxu0 %v845
    %863 = vmatpush.msra.mxu0 %v844
    %864 = vmatpush.msra.mxu0 %v843
    %865 = vmatpush.msra.mxu0 %v842
    %866 = vmatpush.msra.mxu0 %v841
    %867 = vmatpush.msra.mxu0 %v840
    %868 = vmatpush.msra.mxu0 %v839
    %869 = vmatpush.msra.mxu0 %v838
    %870 = vmatmul.f32.gmra.mxu0 %v852
    %v871 = vpop.f32.mrf.mxu0
    %v872 = vadd.f32 %v848, %v871
    %873 = vdwg.mxu0
    %v874 = vtanh.pop %v872
    %876 = vrot.lane.b32.xlu0 %v149, 32
    %v877 = vpop.permute.xlu0 %876
    %v879 = vsel %vm340, %v874, %v835
    %v880 = vsel %vm850, %v879, %v877
    %881 = vst.msk [vmem:[%s7] sm:$0xff] %vm91, %v880
    // Predicated region
    $region42: #{tree_rnn_cell_lstm_forward.1} parent=1 // pred_check
      _
    $region43: #{tree_rnn_cell_lstm_forward.1} parent=1 // pred_check_branch
      %883 = sbr.rel (0) target = $region45
    $region44: #{tree_rnn_cell_lstm_forward.1} parent=1 // pred_region
      _
    $region45: #{tree_rnn_cell_lstm_forward.1} parent=1 // pred_fallthru
      _
    // Predicated region
    $region46: #{tree_rnn_cell_lstm_forward.1} parent=1 // pred_check
      _
    $region47: #{tree_rnn_cell_lstm_forward.1} parent=1 // pred_check_branch
      %885 = sbr.rel (0) target = $region49
    $region48: #{tree_rnn_cell_lstm_forward.1} parent=1 // pred_region
      _
    $region49: #{tree_rnn_cell_lstm_forward.1} parent=1 // pred_fallthru
      _
    %886 = vsyncpa [#allocation3], 1
    %887 = vsyncpa [#allocation5], 1

</llo_original>
